<compile_context>
chip_gen: v5e
topology: v5e:2x2
jax: 0.10.0
libtpu: 0.0.40
codegen_flags: <defaults>
</compile_context>

<pallas_src>
import functools

import jax
import jax.numpy as jnp
from jax.experimental import pallas as pl
from jax.experimental.pallas import tpu as pltpu


def _round_up(x, m):
    return ((x + m - 1) // m) * m


def _distill_cls_kernel(x_ref, w1_ref, b1_ref, w2_ref, b2_ref,
                        wp1_ref, bp1_ref, wp2_ref, bp2_ref,
                        *rest, compute_distill):
    if compute_distill:
        (wd1_ref, bd1_ref, wd2_ref, bd2_ref,
         logits_ref, dist_ref, gf_acc, df_acc) = rest
    else:
        logits_ref, gf_acc = rest
        wd1_ref = bd1_ref = wd2_ref = bd2_ref = None
        dist_ref = df_acc = None

    chunk = pl.program_id(1)
    n_chunks = pl.num_programs(1)

    # ---- init the running-max accumulators on the first chunk of this batch
    @pl.when(chunk == 0)
    def _():
        gf_acc[...] = jnp.full(gf_acc.shape, -jnp.inf, gf_acc.dtype)
        if compute_distill:
            df_acc[...] = jnp.full(df_acc.shape, -jnp.inf, df_acc.dtype)

    # ---- shared per-point MLP on this point chunk (bf16 MXU, f32 accumulate)
    x = x_ref[0]                                            # (tile_n, c_pad) bf16
    h1 = jnp.maximum(
        jnp.dot(x, w1_ref[...], preferred_element_type=jnp.float32)
        + b1_ref[...], 0.0)                                 # (tile_n, H1p) f32
    h2 = jnp.maximum(
        jnp.dot(h1.astype(jnp.bfloat16), w2_ref[...],
                preferred_element_type=jnp.float32)
        + b2_ref[...], 0.0)                                 # (tile_n, H2p) f32

    # ---- running global max-pool over points (single sublane reduce, no loop)
    gf_acc[...] = jnp.maximum(gf_acc[...], jnp.max(h2, axis=0, keepdims=True))
    if compute_distill:
        df_acc[...] = jnp.maximum(df_acc[...],
                                  jnp.max(h1, axis=0, keepdims=True))

    # ---- heads on the final chunk of this batch element
    @pl.when(chunk == n_chunks - 1)
    def _():
        gf = gf_acc[...]                                    # (1, H2p)
        p = jnp.maximum(
            jnp.dot(gf, wp1_ref[...], preferred_element_type=jnp.float32)
            + bp1_ref[...], 0.0)
        logits_ref[0] = (
            jnp.dot(p, wp2_ref[...], preferred_element_type=jnp.float32)
            + bp2_ref[...]).astype(logits_ref.dtype)
        if compute_distill:
            df = df_acc[...]                                # (1, H1p)
            q = jnp.maximum(
                jnp.dot(df, wd1_ref[...], preferred_element_type=jnp.float32)
                + bd1_ref[...], 0.0)
            dist_ref[0] = (
                jnp.dot(q, wd2_ref[...], preferred_element_type=jnp.float32)
                + bd2_ref[...]).astype(dist_ref.dtype)


@functools.partial(jax.jit,
                   static_argnames=("num_classes", "training", "tile_rows"))
def distill_cls_forward(pos, f0, params, *, num_classes, training=True,
                        tile_rows=512):
    """pos: (B, N, 3) f32; f0: (B, C_feat, N) f32 (PyTorch NCW layout)."""
    (w1, b1, w2, b2, wp1, bp1, wp2, bp2, wd1, bd1, wd2, bd2) = params
    B, N, _ = pos.shape
    c_pad = w1.shape[0]
    h1p = w1.shape[1]
    h2p = w2.shape[1]
    hpp = wp1.shape[1]
    ncp = wp2.shape[1]

    # Layout glue (plain XLA under jit): fuse pos + channels-last features into
    # one (B, N, c_pad) slab so the kernel runs a single first-layer matmul.
    # TODO(synk): an in-kernel NCW (channels-on-sublane, points-on-lane)
    # contraction would remove this XLA-side transpose of f0.
    feats = jnp.transpose(f0, (0, 2, 1))                    # (B, N, C_feat)
    x = jnp.concatenate([pos, feats], axis=-1)              # (B, N, 3+C_feat)
    c_in = x.shape[-1]
    if c_in < c_pad:
        x = jnp.pad(x, ((0, 0), (0, 0), (0, c_pad - c_in)))
    x = x.astype(jnp.bfloat16)                              # bf16 MXU operand

    tile_n = min(tile_rows, N)
    assert N % tile_n == 0, "N must be a multiple of the point-chunk size"
    assert tile_n % 16 == 0, "point-chunk size must be a multiple of 16"
    n_chunks = N // tile_n
    grid = (B, n_chunks)

    def w_spec(a):
        return pl.BlockSpec(a.shape, lambda b, c: (0, 0))

    in_arrays = [x, w1, b1, w2, b2, wp1, bp1, wp2, bp2]
    in_specs = [pl.BlockSpec((1, tile_n, c_pad), lambda b, c: (b, c, 0))]
    in_specs += [w_spec(a) for a in in_arrays[1:]]

    # Lane-dense (1, 1, ncp) logit blocks -> unmasked vst; sliced in wrapper.
    out_shape = [jax.ShapeDtypeStruct((B, 1, ncp), jnp.float32)]
    out_specs = [pl.BlockSpec((1, 1, ncp), lambda b, c: (b, 0, 0))]
    scratch = [pltpu.VMEM((1, h2p), jnp.float32)]           # running gf max

    if training:
        in_arrays += [wd1, bd1, wd2, bd2]
        in_specs += [w_spec(a) for a in (wd1, bd1, wd2, bd2)]
        out_shape.append(jax.ShapeDtypeStruct((B, 1, ncp), jnp.float32))
        out_specs.append(pl.BlockSpec((1, 1, ncp), lambda b, c: (b, 0, 0)))
        scratch.append(pltpu.VMEM((1, h1p), jnp.float32))   # running df max

    # Rough per-core VMEM budget from actual block sizes (+ headroom).
    weight_bytes = sum(int(a.size) * a.dtype.itemsize for a in in_arrays[1:])
    vmem_est = (2 * tile_n * 128 * 2                        # x block, 2 bufs
                + 2 * weight_bytes                          # resident weights
                + tile_n * (h1p + h2p) * 4                  # h1/h2 intermediates
                + 4 * len(out_shape) * ncp * 4              # output blocks
                + (h1p + h2p) * 4)                          # accumulators
    vmem_limit = int(min(max(4 * vmem_est, 16 * 1024 * 1024), 64 * 1024 * 1024))

    flops = 2 * B * N * (c_pad * h1p + h1p * h2p)
    flops += (2 if training else 1) * 2 * B * (h2p * hpp + hpp * ncp)
    bytes_accessed = (int(x.size) * 2 + weight_bytes
                      + len(out_shape) * B * ncp * 4)

    result = pl.pallas_call(
        functools.partial(_distill_cls_kernel, compute_distill=training),
        out_shape=tuple(out_shape),
        grid_spec=pltpu.PrefetchScalarGridSpec(
            num_scalar_prefetch=0,
            grid=grid,
            in_specs=in_specs,
            out_specs=tuple(out_specs),
            scratch_shapes=scratch),
        compiler_params=pltpu.CompilerParams(
            dimension_semantics=("parallel", "arbitrary"),
            vmem_limit_bytes=vmem_limit),
        cost_estimate=pl.CostEstimate(flops=flops, transcendentals=0,
                                      bytes_accessed=bytes_accessed),
    )(*in_arrays)

    if training:
        logits, dist_logits = result
        return (logits[:, 0, :num_classes], dist_logits[:, 0, :num_classes])
    (logits,) = result
    return logits[:, 0, :num_classes]


def init_params(key, c_feat, h1, h2, hp, num_classes):
    """Raw (unpadded, f32) parameters mirroring the PyTorch module layout."""
    ks = jax.random.split(key, 6)

    def lin(k, fan_in, fan_out):
        return jax.random.normal(k, (fan_in, fan_out), jnp.float32) * (1.0 / (fan_in ** 0.5))

    w1 = lin(ks[0], 3 + c_feat, h1)
    b1 = jnp.zeros((1, h1), jnp.float32)
    w2 = lin(ks[1], h1, h2)
    b2 = jnp.zeros((1, h2), jnp.float32)
    wp1 = lin(ks[2], h2, hp)
    bp1 = jnp.zeros((1, hp), jnp.float32)
    wp2 = lin(ks[3], hp, num_classes)
    bp2 = jnp.zeros((1, num_classes), jnp.float32)
    wd1 = lin(ks[4], h1, hp)
    bd1 = jnp.zeros((1, hp), jnp.float32)
    wd2 = lin(ks[5], hp, num_classes)
    bd2 = jnp.zeros((1, num_classes), jnp.float32)
    return (w1, b1, w2, b2, wp1, bp1, wp2, bp2, wd1, bd1, wd2, bd2)


def prepare_params(raw_params):
    """One-time (outside jit) pad-to-lane-width + bf16 cast of MXU operands."""
    (w1, b1, w2, b2, wp1, bp1, wp2, bp2, wd1, bd1, wd2, bd2) = raw_params

    def pad2(a, rows, cols):
        return jnp.pad(a, ((0, rows - a.shape[0]), (0, cols - a.shape[1])))

    c_pad = _round_up(w1.shape[0], 8)
    h1p = _round_up(w1.shape[1], 128)
    h2p = _round_up(w2.shape[1], 128)
    hpp = _round_up(wp1.shape[1], 128)
    ncp = _round_up(wp2.shape[1], 128)

    return (
        pad2(w1, c_pad, h1p).astype(jnp.bfloat16),   # encoder layer 1 (bf16 MXU)
        pad2(b1, 1, h1p),
        pad2(w2, h1p, h2p).astype(jnp.bfloat16),     # encoder layer 2 (bf16 MXU)
        pad2(b2, 1, h2p),
        pad2(wp1, h2p, hpp), pad2(bp1, 1, hpp),
        pad2(wp2, hpp, ncp), pad2(bp2, 1, ncp),
        pad2(wd1, h1p, hpp), pad2(bd1, 1, hpp),
        pad2(wd2, hpp, ncp), pad2(bd2, 1, ncp),
    )


def _reference_forward(pos, f0, raw_params, *, training=True):
    """Pure-JAX reference (mirrors the kernel's bf16-MXU / f32-acc policy)."""
    (w1, b1, w2, b2, wp1, bp1, wp2, bp2, wd1, bd1, wd2, bd2) = raw_params
    bf = jnp.bfloat16
    x = jnp.concatenate([pos, jnp.transpose(f0, (0, 2, 1))], axis=-1)
    h1 = jax.nn.relu(jnp.einsum("bnc,ch->bnh", x.astype(bf), w1.astype(bf),
                                preferred_element_type=jnp.float32) + b1)
    h2 = jax.nn.relu(jnp.einsum("bnh,hk->bnk", h1.astype(bf), w2.astype(bf),
                                preferred_element_type=jnp.float32) + b2)
    gf = h2.max(axis=1)
    logits = jax.nn.relu(gf @ wp1 + bp1) @ wp2 + bp2
    if not training:
        return logits
    df = h1.max(axis=1)
    dist = jax.nn.relu(df @ wd1 + bd1) @ wd2 + bd2
    return logits, dist


if __name__ == "__main__":
    key = jax.random.PRNGKey(0)
    k_pos, k_feat, k_param = jax.random.split(key, 3)

    B, N = 2, 128              # 2 batches x 128 points -> 2 chunks of 64
    C_FEAT = 4                 # extra per-point features (x) in NCW layout
    H1 = 32                    # encoder.distill_channels
    H2 = 64                    # encoder.out_channels
    HP = 32                    # head hidden width
    NUM_CLASSES = 16

    pos = jax.random.normal(k_pos, (B, N, 3), jnp.float32)
    f0 = jax.random.normal(k_feat, (B, C_FEAT, N), jnp.float32)
    raw_params = init_params(k_param, C_FEAT, H1, H2, HP, NUM_CLASSES)
    params = prepare_params(raw_params)           # pad + cast once, outside jit

    # training path: (prediction(global_feat), dist_head(distill_feature))
    logits, dist_logits = distill_cls_forward(
        pos, f0, params, num_classes=NUM_CLASSES, training=True, tile_rows=64)
    jax.block_until_ready((logits, dist_logits))
    assert logits.shape == (B, NUM_CLASSES)
    assert dist_logits.shape == (B, NUM_CLASSES)

    # eval path: prediction(global_feat) only (distill head fully skipped)
    eval_logits = distill_cls_forward(
        pos, f0, params, num_classes=NUM_CLASSES, training=False, tile_rows=64)
    jax.block_until_ready(eval_logits)
    assert eval_logits.shape == (B, NUM_CLASSES)

    # cross-check against the pure-JAX reference
    ref_logits, ref_dist = _reference_forward(pos, f0, raw_params, training=True)
    assert jnp.allclose(logits, ref_logits, rtol=2e-2, atol=2e-2)
    assert jnp.allclose(dist_logits, ref_dist, rtol=2e-2, atol=2e-2)
    assert jnp.allclose(eval_logits, ref_logits, rtol=2e-2, atol=2e-2)

    print("KERNEL_OK")
</pallas_src>

<mosaic_0001>
module attributes {stable_mosaic.version = 11 : i64} {
  func.func @_distill_cls_kernel(%arg0: i32, %arg1: i32, %arg2: memref<1x64x8xbf16, #tpu.memory_space<vmem>>, %arg3: memref<8x128xbf16, #tpu.memory_space<vmem>>, %arg4: memref<1x128xf32, #tpu.memory_space<vmem>>, %arg5: memref<128x128xbf16, #tpu.memory_space<vmem>>, %arg6: memref<1x128xf32, #tpu.memory_space<vmem>>, %arg7: memref<128x128xf32, #tpu.memory_space<vmem>>, %arg8: memref<1x128xf32, #tpu.memory_space<vmem>>, %arg9: memref<128x128xf32, #tpu.memory_space<vmem>>, %arg10: memref<1x128xf32, #tpu.memory_space<vmem>>, %arg11: memref<128x128xf32, #tpu.memory_space<vmem>>, %arg12: memref<1x128xf32, #tpu.memory_space<vmem>>, %arg13: memref<128x128xf32, #tpu.memory_space<vmem>>, %arg14: memref<1x128xf32, #tpu.memory_space<vmem>>, %arg15: memref<1x1x128xf32, #tpu.memory_space<vmem>>, %arg16: memref<1x1x128xf32, #tpu.memory_space<vmem>>, %arg17: memref<1x128xf32, #tpu.memory_space<vmem>>, %arg18: memref<1x128xf32, #tpu.memory_space<vmem>>) attributes {dimension_semantics = [#tpu.dimension_semantics<parallel>, #tpu.dimension_semantics<arbitrary>], iteration_bounds = array<i64: 2, 2>, scalar_prefetch = 0 : i64, scratch_operands = 2 : i64, tpu.core_type = #tpu.core_type<tc>, window_params = [{transform_indices = @transform_0, window_bounds = array<i64: 1, 64, 8>}, {pipeline_mode = #tpu.pipeline_mode<synchronous>, transform_indices = @transform_1, window_bounds = array<i64: 8, 128>}, {pipeline_mode = #tpu.pipeline_mode<synchronous>, transform_indices = @transform_2, window_bounds = array<i64: 1, 128>}, {pipeline_mode = #tpu.pipeline_mode<synchronous>, transform_indices = @transform_3, window_bounds = array<i64: 128, 128>}, {pipeline_mode = #tpu.pipeline_mode<synchronous>, transform_indices = @transform_4, window_bounds = array<i64: 1, 128>}, {pipeline_mode = #tpu.pipeline_mode<synchronous>, transform_indices = @transform_5, window_bounds = array<i64: 128, 128>}, {pipeline_mode = #tpu.pipeline_mode<synchronous>, transform_indices = @transform_6, window_bounds = array<i64: 1, 128>}, {pipeline_mode = #tpu.pipeline_mode<synchronous>, transform_indices = @transform_7, window_bounds = array<i64: 128, 128>}, {pipeline_mode = #tpu.pipeline_mode<synchronous>, transform_indices = @transform_8, window_bounds = array<i64: 1, 128>}, {pipeline_mode = #tpu.pipeline_mode<synchronous>, transform_indices = @transform_9, window_bounds = array<i64: 128, 128>}, {pipeline_mode = #tpu.pipeline_mode<synchronous>, transform_indices = @transform_10, window_bounds = array<i64: 1, 128>}, {pipeline_mode = #tpu.pipeline_mode<synchronous>, transform_indices = @transform_11, window_bounds = array<i64: 128, 128>}, {pipeline_mode = #tpu.pipeline_mode<synchronous>, transform_indices = @transform_12, window_bounds = array<i64: 1, 128>}, {transform_indices = @transform_13, window_bounds = array<i64: 1, 1, 128>}, {transform_indices = @transform_14, window_bounds = array<i64: 1, 1, 128>}]} {
    %c0_i32 = arith.constant 0 : i32
    %0 = arith.cmpi eq, %arg1, %c0_i32 : i32
    %1 = arith.extui %0 : i1 to i32
    %c0_i32_0 = arith.constant 0 : i32
    %2 = arith.cmpi ne, %1, %c0_i32_0 : i32
    scf.if %2 {
      %cst_25 = arith.constant 0xFF800000 : f32
      %33 = vector.broadcast %cst_25 : f32 to vector<1x128xf32>
      %c0_26 = arith.constant 0 : index
      %c0_27 = arith.constant 0 : index
      %34 = vector.load %arg17[%c0_26, %c0_27] : memref<1x128xf32, #tpu.memory_space<vmem>>, vector<1x128xf32>
      tpu.vector_store %arg17[%c0_26, %c0_27], %33 {strides = array<i32>} : memref<1x128xf32, #tpu.memory_space<vmem>>, vector<1x128xf32>,
      %cst_28 = arith.constant 0xFF800000 : f32
      %35 = vector.broadcast %cst_28 : f32 to vector<1x128xf32>
      %c0_29 = arith.constant 0 : index
      %c0_30 = arith.constant 0 : index
      %36 = vector.load %arg18[%c0_29, %c0_30] : memref<1x128xf32, #tpu.memory_space<vmem>>, vector<1x128xf32>
      tpu.vector_store %arg18[%c0_29, %c0_30], %35 {strides = array<i32>} : memref<1x128xf32, #tpu.memory_space<vmem>>, vector<1x128xf32>,
    } else {
    }
    %c0 = arith.constant 0 : index
    %c0_1 = arith.constant 0 : index
    %c0_2 = arith.constant 0 : index
    %3 = vector.load %arg2[%c0, %c0_1, %c0_2] : memref<1x64x8xbf16, #tpu.memory_space<vmem>>, vector<1x64x8xbf16>
    %4 = vector.shape_cast %3 : vector<1x64x8xbf16> to vector<64x8xbf16>
    %c0_3 = arith.constant 0 : index
    %c0_4 = arith.constant 0 : index
    %5 = vector.load %arg3[%c0_3, %c0_4] : memref<8x128xbf16, #tpu.memory_space<vmem>>, vector<8x128xbf16>
    %cst = arith.constant dense<0.000000e+00> : vector<64x128xf32>
    %6 = tpu.matmul %4, %5, %cst {dimension_numbers = #tpu.dot_dimension_numbers<[1], [0], [0], [1], [0, 0, 1, 1], [], []>} : vector<64x8xbf16>, vector<8x128xbf16>, vector<64x128xf32> -> vector<64x128xf32>
    %c0_5 = arith.constant 0 : index
    %c0_6 = arith.constant 0 : index
    %7 = vector.load %arg4[%c0_5, %c0_6] : memref<1x128xf32, #tpu.memory_space<vmem>>, vector<1x128xf32>
    %8 = vector.broadcast %7 : vector<1x128xf32> to vector<64x128xf32>
    %9 = arith.addf %6, %8 : vector<64x128xf32>
    %cst_7 = arith.constant 0.000000e+00 : f32
    %10 = vector.broadcast %cst_7 : f32 to vector<64x128xf32>
    %11 = arith.maximumf %9, %10 : vector<64x128xf32>
    %12 = arith.truncf %11 : vector<64x128xf32> to vector<64x128xbf16>
    %c0_8 = arith.constant 0 : index
    %c0_9 = arith.constant 0 : index
    %13 = vector.load %arg5[%c0_8, %c0_9] : memref<128x128xbf16, #tpu.memory_space<vmem>>, vector<128x128xbf16>
    %cst_10 = arith.constant dense<0.000000e+00> : vector<64x128xf32>
    %14 = tpu.matmul %12, %13, %cst_10 {dimension_numbers = #tpu.dot_dimension_numbers<[1], [0], [0], [1], [0, 0, 1, 1], [], []>} : vector<64x128xbf16>, vector<128x128xbf16>, vector<64x128xf32> -> vector<64x128xf32>
    %c0_11 = arith.constant 0 : index
    %c0_12 = arith.constant 0 : index
    %15 = vector.load %arg6[%c0_11, %c0_12] : memref<1x128xf32, #tpu.memory_space<vmem>>, vector<1x128xf32>
    %16 = vector.broadcast %15 : vector<1x128xf32> to vector<64x128xf32>
    %17 = arith.addf %14, %16 : vector<64x128xf32>
    %cst_13 = arith.constant 0.000000e+00 : f32
    %18 = vector.broadcast %cst_13 : f32 to vector<64x128xf32>
    %19 = arith.maximumf %17, %18 : vector<64x128xf32>
    %c0_14 = arith.constant 0 : index
    %c0_15 = arith.constant 0 : index
    %20 = vector.load %arg17[%c0_14, %c0_15] : memref<1x128xf32, #tpu.memory_space<vmem>>, vector<1x128xf32>
    %cst_16 = arith.constant dense<0xFF800000> : vector<128xf32>
    %21 = vector.multi_reduction <maximumf>, %19, %cst_16 [0] : vector<64x128xf32> to vector<128xf32>
    %22 = vector.shape_cast %21 : vector<128xf32> to vector<1x128xf32>
    %23 = arith.maximumf %20, %22 : vector<1x128xf32>
    %c0_17 = arith.constant 0 : index
    %c0_18 = arith.constant 0 : index
    %24 = vector.load %arg17[%c0_17, %c0_18] : memref<1x128xf32, #tpu.memory_space<vmem>>, vector<1x128xf32>
    tpu.vector_store %arg17[%c0_17, %c0_18], %23 {strides = array<i32>} : memref<1x128xf32, #tpu.memory_space<vmem>>, vector<1x128xf32>,
    %c0_19 = arith.constant 0 : index
    %c0_20 = arith.constant 0 : index
    %25 = vector.load %arg18[%c0_19, %c0_20] : memref<1x128xf32, #tpu.memory_space<vmem>>, vector<1x128xf32>
    %cst_21 = arith.constant dense<0xFF800000> : vector<128xf32>
    %26 = vector.multi_reduction <maximumf>, %11, %cst_21 [0] : vector<64x128xf32> to vector<128xf32>
    %27 = vector.shape_cast %26 : vector<128xf32> to vector<1x128xf32>
    %28 = arith.maximumf %25, %27 : vector<1x128xf32>
    %c0_22 = arith.constant 0 : index
    %c0_23 = arith.constant 0 : index
    %29 = vector.load %arg18[%c0_22, %c0_23] : memref<1x128xf32, #tpu.memory_space<vmem>>, vector<1x128xf32>
    tpu.vector_store %arg18[%c0_22, %c0_23], %28 {strides = array<i32>} : memref<1x128xf32, #tpu.memory_space<vmem>>, vector<1x128xf32>,
    %c1_i32 = arith.constant 1 : i32
    %30 = arith.cmpi eq, %arg1, %c1_i32 : i32
    %31 = arith.extui %30 : i1 to i32
    %c0_i32_24 = arith.constant 0 : i32
    %32 = arith.cmpi ne, %31, %c0_i32_24 : i32
    scf.if %32 {
      %c0_25 = arith.constant 0 : index
      %c0_26 = arith.constant 0 : index
      %33 = vector.load %arg17[%c0_25, %c0_26] : memref<1x128xf32, #tpu.memory_space<vmem>>, vector<1x128xf32>
      %c0_27 = arith.constant 0 : index
      %c0_28 = arith.constant 0 : index
      %34 = vector.load %arg7[%c0_27, %c0_28] : memref<128x128xf32, #tpu.memory_space<vmem>>, vector<128x128xf32>
      %cst_29 = arith.constant dense<0.000000e+00> : vector<1x128xf32>
      %35 = tpu.matmul %33, %34, %cst_29 {dimension_numbers = #tpu.dot_dimension_numbers<[1], [0], [0], [1], [0, 0, 1, 1], [], []>} : vector<1x128xf32>, vector<128x128xf32>, vector<1x128xf32> -> vector<1x128xf32>
      %c0_30 = arith.constant 0 : index
      %c0_31 = arith.constant 0 : index
      %36 = vector.load %arg8[%c0_30, %c0_31] : memref<1x128xf32, #tpu.memory_space<vmem>>, vector<1x128xf32>
      %37 = arith.addf %35, %36 : vector<1x128xf32>
      %cst_32 = arith.constant 0.000000e+00 : f32
      %38 = vector.broadcast %cst_32 : f32 to vector<1x128xf32>
      %39 = arith.maximumf %37, %38 : vector<1x128xf32>
      %c0_33 = arith.constant 0 : index
      %c0_34 = arith.constant 0 : index
      %40 = vector.load %arg9[%c0_33, %c0_34] : memref<128x128xf32, #tpu.memory_space<vmem>>, vector<128x128xf32>
      %cst_35 = arith.constant dense<0.000000e+00> : vector<1x128xf32>
      %41 = tpu.matmul %39, %40, %cst_35 {dimension_numbers = #tpu.dot_dimension_numbers<[1], [0], [0], [1], [0, 0, 1, 1], [], []>} : vector<1x128xf32>, vector<128x128xf32>, vector<1x128xf32> -> vector<1x128xf32>
      %c0_36 = arith.constant 0 : index
      %c0_37 = arith.constant 0 : index
      %42 = vector.load %arg10[%c0_36, %c0_37] : memref<1x128xf32, #tpu.memory_space<vmem>>, vector<1x128xf32>
      %43 = arith.addf %41, %42 : vector<1x128xf32>
      %c0_38 = arith.constant 0 : index
      %c0_39 = arith.constant 0 : index
      %c0_40 = arith.constant 0 : index
      %44 = vector.load %arg15[%c0_38, %c0_39, %c0_40] : memref<1x1x128xf32, #tpu.memory_space<vmem>>, vector<1x1x128xf32>
      %45 = vector.shape_cast %44 : vector<1x1x128xf32> to vector<1x128xf32>
      %46 = vector.shape_cast %43 : vector<1x128xf32> to vector<1x1x128xf32>
      tpu.vector_store %arg15[%c0_38, %c0_39, %c0_40], %46 {strides = array<i32>} : memref<1x1x128xf32, #tpu.memory_space<vmem>>, vector<1x1x128xf32>,
      %c0_41 = arith.constant 0 : index
      %c0_42 = arith.constant 0 : index
      %47 = vector.load %arg18[%c0_41, %c0_42] : memref<1x128xf32, #tpu.memory_space<vmem>>, vector<1x128xf32>
      %c0_43 = arith.constant 0 : index
      %c0_44 = arith.constant 0 : index
      %48 = vector.load %arg11[%c0_43, %c0_44] : memref<128x128xf32, #tpu.memory_space<vmem>>, vector<128x128xf32>
      %cst_45 = arith.constant dense<0.000000e+00> : vector<1x128xf32>
      %49 = tpu.matmul %47, %48, %cst_45 {dimension_numbers = #tpu.dot_dimension_numbers<[1], [0], [0], [1], [0, 0, 1, 1], [], []>} : vector<1x128xf32>, vector<128x128xf32>, vector<1x128xf32> -> vector<1x128xf32>
      %c0_46 = arith.constant 0 : index
      %c0_47 = arith.constant 0 : index
      %50 = vector.load %arg12[%c0_46, %c0_47] : memref<1x128xf32, #tpu.memory_space<vmem>>, vector<1x128xf32>
      %51 = arith.addf %49, %50 : vector<1x128xf32>
      %cst_48 = arith.constant 0.000000e+00 : f32
      %52 = vector.broadcast %cst_48 : f32 to vector<1x128xf32>
      %53 = arith.maximumf %51, %52 : vector<1x128xf32>
      %c0_49 = arith.constant 0 : index
      %c0_50 = arith.constant 0 : index
      %54 = vector.load %arg13[%c0_49, %c0_50] : memref<128x128xf32, #tpu.memory_space<vmem>>, vector<128x128xf32>
      %cst_51 = arith.constant dense<0.000000e+00> : vector<1x128xf32>
      %55 = tpu.matmul %53, %54, %cst_51 {dimension_numbers = #tpu.dot_dimension_numbers<[1], [0], [0], [1], [0, 0, 1, 1], [], []>} : vector<1x128xf32>, vector<128x128xf32>, vector<1x128xf32> -> vector<1x128xf32>
      %c0_52 = arith.constant 0 : index
      %c0_53 = arith.constant 0 : index
      %56 = vector.load %arg14[%c0_52, %c0_53] : memref<1x128xf32, #tpu.memory_space<vmem>>, vector<1x128xf32>
      %57 = arith.addf %55, %56 : vector<1x128xf32>
      %c0_54 = arith.constant 0 : index
      %c0_55 = arith.constant 0 : index
      %c0_56 = arith.constant 0 : index
      %58 = vector.load %arg16[%c0_54, %c0_55, %c0_56] : memref<1x1x128xf32, #tpu.memory_space<vmem>>, vector<1x1x128xf32>
      %59 = vector.shape_cast %58 : vector<1x1x128xf32> to vector<1x128xf32>
      %60 = vector.shape_cast %57 : vector<1x128xf32> to vector<1x1x128xf32>
      tpu.vector_store %arg16[%c0_54, %c0_55, %c0_56], %60 {strides = array<i32>} : memref<1x1x128xf32, #tpu.memory_space<vmem>>, vector<1x1x128xf32>,
    } else {
    }
    return
  }
  func.func @transform_0(%arg0: i32, %arg1: i32) -> (i32, i32, i32) {
    %c0_i32 = arith.constant 0 : i32
    %c0_i32_0 = arith.constant 0 : i32
    return %arg0, %arg1, %c0_i32 : i32, i32, i32
  }
  func.func @transform_1(%arg0: i32, %arg1: i32) -> (i32, i32) {
    %c0_i32 = arith.constant 0 : i32
    %c0_i32_0 = arith.constant 0 : i32
    %c0_i32_1 = arith.constant 0 : i32
    return %c0_i32, %c0_i32_0 : i32, i32
  }
  func.func @transform_2(%arg0: i32, %arg1: i32) -> (i32, i32) {
    %c0_i32 = arith.constant 0 : i32
    %c0_i32_0 = arith.constant 0 : i32
    %c0_i32_1 = arith.constant 0 : i32
    return %c0_i32, %c0_i32_0 : i32, i32
  }
  func.func @transform_3(%arg0: i32, %arg1: i32) -> (i32, i32) {
    %c0_i32 = arith.constant 0 : i32
    %c0_i32_0 = arith.constant 0 : i32
    %c0_i32_1 = arith.constant 0 : i32
    return %c0_i32, %c0_i32_0 : i32, i32
  }
  func.func @transform_4(%arg0: i32, %arg1: i32) -> (i32, i32) {
    %c0_i32 = arith.constant 0 : i32
    %c0_i32_0 = arith.constant 0 : i32
    %c0_i32_1 = arith.constant 0 : i32
    return %c0_i32, %c0_i32_0 : i32, i32
  }
  func.func @transform_5(%arg0: i32, %arg1: i32) -> (i32, i32) {
    %c0_i32 = arith.constant 0 : i32
    %c0_i32_0 = arith.constant 0 : i32
    %c0_i32_1 = arith.constant 0 : i32
    return %c0_i32, %c0_i32_0 : i32, i32
  }
  func.func @transform_6(%arg0: i32, %arg1: i32) -> (i32, i32) {
    %c0_i32 = arith.constant 0 : i32
    %c0_i32_0 = arith.constant 0 : i32
    %c0_i32_1 = arith.constant 0 : i32
    return %c0_i32, %c0_i32_0 : i32, i32
  }
  func.func @transform_7(%arg0: i32, %arg1: i32) -> (i32, i32) {
    %c0_i32 = arith.constant 0 : i32
    %c0_i32_0 = arith.constant 0 : i32
    %c0_i32_1 = arith.constant 0 : i32
    return %c0_i32, %c0_i32_0 : i32, i32
  }
  func.func @transform_8(%arg0: i32, %arg1: i32) -> (i32, i32) {
    %c0_i32 = arith.constant 0 : i32
    %c0_i32_0 = arith.constant 0 : i32
    %c0_i32_1 = arith.constant 0 : i32
    return %c0_i32, %c0_i32_0 : i32, i32
  }
  func.func @transform_9(%arg0: i32, %arg1: i32) -> (i32, i32) {
    %c0_i32 = arith.constant 0 : i32
    %c0_i32_0 = arith.constant 0 : i32
    %c0_i32_1 = arith.constant 0 : i32
    return %c0_i32, %c0_i32_0 : i32, i32
  }
  func.func @transform_10(%arg0: i32, %arg1: i32) -> (i32, i32) {
    %c0_i32 = arith.constant 0 : i32
    %c0_i32_0 = arith.constant 0 : i32
    %c0_i32_1 = arith.constant 0 : i32
    return %c0_i32, %c0_i32_0 : i32, i32
  }
  func.func @transform_11(%arg0: i32, %arg1: i32) -> (i32, i32) {
    %c0_i32 = arith.constant 0 : i32
    %c0_i32_0 = arith.constant 0 : i32
    %c0_i32_1 = arith.constant 0 : i32
    return %c0_i32, %c0_i32_0 : i32, i32
  }
  func.func @transform_12(%arg0: i32, %arg1: i32) -> (i32, i32) {
    %c0_i32 = arith.constant 0 : i32
    %c0_i32_0 = arith.constant 0 : i32
    %c0_i32_1 = arith.constant 0 : i32
    return %c0_i32, %c0_i32_0 : i32, i32
  }
  func.func @transform_13(%arg0: i32, %arg1: i32) -> (i32, i32, i32) {
    %c0_i32 = arith.constant 0 : i32
    %c0_i32_0 = arith.constant 0 : i32
    %c0_i32_1 = arith.constant 0 : i32
    return %arg0, %c0_i32, %c0_i32_0 : i32, i32, i32
  }
  func.func @transform_14(%arg0: i32, %arg1: i32) -> (i32, i32, i32) {
    %c0_i32 = arith.constant 0 : i32
    %c0_i32_0 = arith.constant 0 : i32
    %c0_i32_1 = arith.constant 0 : i32
    return %arg0, %c0_i32, %c0_i32_0 : i32, i32, i32
  }
}

</mosaic_0001>

<llo_original>
// kernel: distill_cls_forward.1
$region0: #{distill_cls_forward.1}
  #allocation0 [shape = 'u32[]', space=smem, size = 0x4, offset = 0x4, fixed_abs, tag = 'smem constant byte address 0x4 - core index']
  #allocation1 [shape = 'u32[72,128]{1,0:T(1,128)}', space=vmem, size = 0x9000, scoped, tag = 'internal scratch']
  #allocation2 [shape = 'f32[1,128]{1,0:T(1,128)}', space=vmem, size = 0x200, scoped, tag = 'scratch operand']
  #allocation3 [shape = 'f32[1,128]{1,0:T(1,128)}', space=vmem, size = 0x200, scoped, tag = 'scratch operand']
  %s0 = inlined_call_operand.vmem [shape: bf16[2,128,8], index: 0, kind: input, shape index: {}]
  %s1 = inlined_call_operand.vmem [shape: bf16[8,128], index: 1, kind: input, shape index: {}]
  %s2 = inlined_call_operand.vmem [shape: f32[1,128], index: 2, kind: input, shape index: {}]
  %s3 = inlined_call_operand.hbm [shape: bf16[128,128], index: 3, kind: input, shape index: {}]
  %s4 = inlined_call_operand.vmem [shape: f32[1,128], index: 4, kind: input, shape index: {}]
  %s5 = inlined_call_operand.vmem [shape: f32[128,128], index: 5, kind: input, shape index: {}]
  %s6 = inlined_call_operand.vmem [shape: f32[1,128], index: 6, kind: input, shape index: {}]
  %s7 = inlined_call_operand.vmem [shape: f32[128,128], index: 7, kind: input, shape index: {}]
  %s8 = inlined_call_operand.vmem [shape: f32[1,128], index: 8, kind: input, shape index: {}]
  %s9 = inlined_call_operand.vmem [shape: f32[128,128], index: 9, kind: input, shape index: {}]
  %s10 = inlined_call_operand.vmem [shape: f32[1,128], index: 10, kind: input, shape index: {}]
  %s11 = inlined_call_operand.hbm [shape: f32[128,128], index: 11, kind: input, shape index: {}]
  %s12 = inlined_call_operand.vmem [shape: f32[1,128], index: 12, kind: input, shape index: {}]
  %s13 = inlined_call_operand.hbm [shape: f32[2,1,128], index: 13, kind: output, shape index: {0}]
  %s14 = inlined_call_operand.hbm [shape: f32[2,1,128], index: 14, kind: output, shape index: {1}]
  %15 = xla_tuple %s13, %s14
  %s16 = sld [smem:[#allocation0]]
  $region109: #{distill_cls_forward.1} parent=0
    _
  %s18 = ssub.s32 1, %s16
  %s19 = scalar_select 0, %s18, %s16
  $region1: #{distill_cls_forward.1} parent=0
    #allocation4 [shape = 'u8[32768]{0}', space=vmem, size = 0x8000, scoped, tag = 'input window, operand 3, single buffered']
    #allocation5 [shape = 's32[2]{0}', space=sflag, size = 0x8, scoped, tag = 'scoped memory for distill_cls_forward.1']
    #allocation6 [shape = 's32[2]{0}', space=sflag, size = 0x8, scoped, tag = 'scoped memory for distill_cls_forward.1']
    #allocation7 [shape = 'u8[65536]{0}', space=vmem, size = 0x10000, scoped, tag = 'input window, operand 11, single buffered']
    #allocation8 [shape = 's32[1]{0}', space=sflag, size = 0x4, scoped, tag = 'scoped memory for distill_cls_forward.1']
    #allocation9 [shape = 'u8[1024]{0}', space=vmem, size = 0x400, scoped, tag = 'output window, operand 0']
    #allocation10 [shape = 'u8[1024]{0}', space=vmem, size = 0x400, scoped, tag = 'output window, operand 1']
    #allocation11 [shape = 's32[2]{0}', space=sflag, size = 0x8, scoped, tag = 'scoped memory for distill_cls_forward.1']
    %20 = vsyncpa [#allocation5], 0
    %21 = vsyncpa [#allocation8], 0
    %22 = vsyncpa [#allocation6], 0
    %s23 = scalar_lea.sflag [#allocation6], 1
    %24 = vsyncpa %s23, 0
    %25 = vsyncpa [#allocation11], 0
    %s26 = scalar_lea.sflag [#allocation11], 1
    %27 = vsyncpa %s26, 0
    loop: start=0, step=1, limit=6
    $region2: #{distill_cls_forward.1} parent=1 // loop_pre_header
      _
    $region3: #{distill_cls_forward.1} parent=1 // loop_header
      %s29 = sphi 0, %s33
      %p30 = scmp.ge.s32.totalorder %s29, 6
      %s36 = sphi 0, %s48
      %s37 = sphi 0, %s44
      %s38 = sphi 0, %s36
      %s39 = sphi 0, %s37
      %s40 = sphi 0, %s38
      %s41 = sphi 0, %s39
      %s53 = sphi 0, %s55
      %s56 = sphi 0, %s53
      %s57 = sphi 0, %s56
      %s73 = sphi 0, %s57
      %s77 = sphi 0, %s77
      %s79 = sphi 0, %s77
      %s80 = sphi 0, %s79
      %s94 = sphi 0, %s80
      %s98 = sphi 0, %s98
      %s100 = sphi 0, %s98
      %s101 = sphi 0, %s100
      %s115 = sphi 0, %s101
      %s119 = sphi 0, %s119
      %s121 = sphi 0, %s119
      %s122 = sphi 0, %s121
      %s136 = sphi 0, %s122
      %s140 = sphi 0, %s140
      %s142 = sphi 0, %s140
      %s143 = sphi 0, %s142
      %s157 = sphi 0, %s143
      %s161 = sphi 0, %s161
      %s163 = sphi 0, %s161
      %s164 = sphi 0, %s163
      %s178 = sphi 0, %s164
      %s182 = sphi 0, %s182
      %s184 = sphi 0, %s182
      %s185 = sphi 0, %s184
      %s199 = sphi 0, %s185
      %s203 = sphi 0, %s203
      %s205 = sphi 0, %s203
      %s206 = sphi 0, %s205
      %s220 = sphi 0, %s206
      %s224 = sphi 0, %s224
      %s226 = sphi 0, %s224
      %s227 = sphi 0, %s226
      %s241 = sphi 0, %s227
      %s245 = sphi 0, %s245
      %s247 = sphi 0, %s245
      %s248 = sphi 0, %s247
      %s262 = sphi 0, %s248
      %s266 = sphi 0, %s266
      %s268 = sphi 0, %s266
      %s269 = sphi 0, %s268
      %s283 = sphi 0, %s269
      %s287 = sphi 0, %s287
      %s289 = sphi 0, %s287
      %s290 = sphi 0, %s289
      %s304 = sphi 0, %s290
      %s308 = sphi 0, %s308
      %s310 = sphi 0, %s308
      %s311 = sphi 0, %s310
      %s325 = sphi 0, %s311
      %s331 = sphi 0, %s333
      %s334 = sphi 0, %s331
      %s335 = sphi 0, %s334
      %s351 = sphi 0, %s335
      %s357 = sphi 0, %s359
      %s360 = sphi 0, %s357
      %s361 = sphi 0, %s360
      %s377 = sphi 0, %s361
    $region4: #{distill_cls_forward.1} parent=1 // loop_header_branch
      %32 = sbr.rel (%p30) target = $region8
    $region5: #{distill_cls_forward.1} parent=1 // loop_body
      %s34 = ssub.s32 %s29, 1
      %s35 = ssub.s32 %s29, 2
      %s42 = sadd.s32 1, %s37
      %p43 = scmp.ge.s32.totalorder %s42, 2
      %s44 = scalar_select %p43, 0, %s42
      %s45 = sadd.s32 1, %s36
      %s46 = scalar_select %p43, %s45, %s36
      %p47 = scmp.ge.s32.totalorder %s46, 2
      %s48 = scalar_select %p47, 0, %s46
      %s49 = ssub.s32 %s36, %s48
      %s50 = ssub.s32 %s37, %s44
      %s51 = sor.u32 %s49, %s50
      %p52 = scmp.eq.s32.totalorder %s51, 0
      %s54 = sadd.s32 %s53, 1
      %s55 = scalar_select %p52, %s53, %s54
      %p58 = pneg %p52
      %p59 = scmp.eq.s32.totalorder %s29, 3
      %p60 = por %p58, %p59
      %p61 = scmp.ne.s32.totalorder %s53, %s56
      %p62 = scmp.eq.s32.totalorder %s29, 0
      %p63 = por %p61, %p62
      %p64 = scmp.ne.s32.totalorder %s53, %s56
      %p65 = scmp.eq.s32.totalorder %s34, 3
      %p66 = por %p64, %p65
      %p67 = scmp.ne.s32.totalorder %s56, %s57
      %p68 = scmp.eq.s32.totalorder %s34, 0
      %p69 = por %p67, %p68
      %p70 = scmp.ne.s32.totalorder %s56, %s57
      %p71 = scmp.eq.s32.totalorder %s35, 3
      %p72 = por %p70, %p71
      %p74 = scmp.ne.s32.totalorder %s57, %s73
      %p75 = scmp.eq.s32.totalorder %s35, 0
      %p76 = por %p74, %p75
      %s78 = sadd.s32 %s77, 1
      %p81 = scmp.eq.s32.totalorder %s29, 3
      %p82 = scmp.ne.s32.totalorder %s77, %s79
      %p83 = scmp.eq.s32.totalorder %s29, 0
      %p84 = por %p82, %p83
      %p85 = scmp.ne.s32.totalorder %s77, %s79
      %p86 = scmp.eq.s32.totalorder %s34, 3
      %p87 = por %p85, %p86
      %p88 = scmp.ne.s32.totalorder %s79, %s80
      %p89 = scmp.eq.s32.totalorder %s34, 0
      %p90 = por %p88, %p89
      %p91 = scmp.ne.s32.totalorder %s79, %s80
      %p92 = scmp.eq.s32.totalorder %s35, 3
      %p93 = por %p91, %p92
      %p95 = scmp.ne.s32.totalorder %s80, %s94
      %p96 = scmp.eq.s32.totalorder %s35, 0
      %p97 = por %p95, %p96
      %s99 = sadd.s32 %s98, 1
      %p102 = scmp.eq.s32.totalorder %s29, 3
      %p103 = scmp.ne.s32.totalorder %s98, %s100
      %p104 = scmp.eq.s32.totalorder %s29, 0
      %p105 = por %p103, %p104
      %p106 = scmp.ne.s32.totalorder %s98, %s100
      %p107 = scmp.eq.s32.totalorder %s34, 3
      %p108 = por %p106, %p107
      %p109 = scmp.ne.s32.totalorder %s100, %s101
      %p110 = scmp.eq.s32.totalorder %s34, 0
      %p111 = por %p109, %p110
      %p112 = scmp.ne.s32.totalorder %s100, %s101
      %p113 = scmp.eq.s32.totalorder %s35, 3
      %p114 = por %p112, %p113
      %p116 = scmp.ne.s32.totalorder %s101, %s115
      %p117 = scmp.eq.s32.totalorder %s35, 0
      %p118 = por %p116, %p117
      %s120 = sadd.s32 %s119, 1
      %p123 = scmp.eq.s32.totalorder %s29, 3
      %p124 = scmp.ne.s32.totalorder %s119, %s121
      %p125 = scmp.eq.s32.totalorder %s29, 0
      %p126 = por %p124, %p125
      %p127 = scmp.ne.s32.totalorder %s119, %s121
      %p128 = scmp.eq.s32.totalorder %s34, 3
      %p129 = por %p127, %p128
      %p130 = scmp.ne.s32.totalorder %s121, %s122
      %p131 = scmp.eq.s32.totalorder %s34, 0
      %p132 = por %p130, %p131
      %p133 = scmp.ne.s32.totalorder %s121, %s122
      %p134 = scmp.eq.s32.totalorder %s35, 3
      %p135 = por %p133, %p134
      %p137 = scmp.ne.s32.totalorder %s122, %s136
      %p138 = scmp.eq.s32.totalorder %s35, 0
      %p139 = por %p137, %p138
      %s141 = sadd.s32 %s140, 1
      %p144 = scmp.eq.s32.totalorder %s29, 3
      %p145 = scmp.ne.s32.totalorder %s140, %s142
      %p146 = scmp.eq.s32.totalorder %s29, 0
      %p147 = por %p145, %p146
      %p148 = scmp.ne.s32.totalorder %s140, %s142
      %p149 = scmp.eq.s32.totalorder %s34, 3
      %p150 = por %p148, %p149
      %p151 = scmp.ne.s32.totalorder %s142, %s143
      %p152 = scmp.eq.s32.totalorder %s34, 0
      %p153 = por %p151, %p152
      %p154 = scmp.ne.s32.totalorder %s142, %s143
      %p155 = scmp.eq.s32.totalorder %s35, 3
      %p156 = por %p154, %p155
      %p158 = scmp.ne.s32.totalorder %s143, %s157
      %p159 = scmp.eq.s32.totalorder %s35, 0
      %p160 = por %p158, %p159
      %s162 = sadd.s32 %s161, 1
      %p165 = scmp.eq.s32.totalorder %s29, 3
      %p166 = scmp.ne.s32.totalorder %s161, %s163
      %p167 = scmp.eq.s32.totalorder %s29, 0
      %p168 = por %p166, %p167
      %p169 = scmp.ne.s32.totalorder %s161, %s163
      %p170 = scmp.eq.s32.totalorder %s34, 3
      %p171 = por %p169, %p170
      %p172 = scmp.ne.s32.totalorder %s163, %s164
      %p173 = scmp.eq.s32.totalorder %s34, 0
      %p174 = por %p172, %p173
      %p175 = scmp.ne.s32.totalorder %s163, %s164
      %p176 = scmp.eq.s32.totalorder %s35, 3
      %p177 = por %p175, %p176
      %p179 = scmp.ne.s32.totalorder %s164, %s178
      %p180 = scmp.eq.s32.totalorder %s35, 0
      %p181 = por %p179, %p180
      %s183 = sadd.s32 %s182, 1
      %p186 = scmp.eq.s32.totalorder %s29, 3
      %p187 = scmp.ne.s32.totalorder %s182, %s184
      %p188 = scmp.eq.s32.totalorder %s29, 0
      %p189 = por %p187, %p188
      %p190 = scmp.ne.s32.totalorder %s182, %s184
      %p191 = scmp.eq.s32.totalorder %s34, 3
      %p192 = por %p190, %p191
      %p193 = scmp.ne.s32.totalorder %s184, %s185
      %p194 = scmp.eq.s32.totalorder %s34, 0
      %p195 = por %p193, %p194
      %p196 = scmp.ne.s32.totalorder %s184, %s185
      %p197 = scmp.eq.s32.totalorder %s35, 3
      %p198 = por %p196, %p197
      %p200 = scmp.ne.s32.totalorder %s185, %s199
      %p201 = scmp.eq.s32.totalorder %s35, 0
      %p202 = por %p200, %p201
      %s204 = sadd.s32 %s203, 1
      %p207 = scmp.eq.s32.totalorder %s29, 3
      %p208 = scmp.ne.s32.totalorder %s203, %s205
      %p209 = scmp.eq.s32.totalorder %s29, 0
      %p210 = por %p208, %p209
      %p211 = scmp.ne.s32.totalorder %s203, %s205
      %p212 = scmp.eq.s32.totalorder %s34, 3
      %p213 = por %p211, %p212
      %p214 = scmp.ne.s32.totalorder %s205, %s206
      %p215 = scmp.eq.s32.totalorder %s34, 0
      %p216 = por %p214, %p215
      %p217 = scmp.ne.s32.totalorder %s205, %s206
      %p218 = scmp.eq.s32.totalorder %s35, 3
      %p219 = por %p217, %p218
      %p221 = scmp.ne.s32.totalorder %s206, %s220
      %p222 = scmp.eq.s32.totalorder %s35, 0
      %p223 = por %p221, %p222
      %s225 = sadd.s32 %s224, 1
      %p228 = scmp.eq.s32.totalorder %s29, 3
      %p229 = scmp.ne.s32.totalorder %s224, %s226
      %p230 = scmp.eq.s32.totalorder %s29, 0
      %p231 = por %p229, %p230
      %p232 = scmp.ne.s32.totalorder %s224, %s226
      %p233 = scmp.eq.s32.totalorder %s34, 3
      %p234 = por %p232, %p233
      %p235 = scmp.ne.s32.totalorder %s226, %s227
      %p236 = scmp.eq.s32.totalorder %s34, 0
      %p237 = por %p235, %p236
      %p238 = scmp.ne.s32.totalorder %s226, %s227
      %p239 = scmp.eq.s32.totalorder %s35, 3
      %p240 = por %p238, %p239
      %p242 = scmp.ne.s32.totalorder %s227, %s241
      %p243 = scmp.eq.s32.totalorder %s35, 0
      %p244 = por %p242, %p243
      %s246 = sadd.s32 %s245, 1
      %p249 = scmp.eq.s32.totalorder %s29, 3
      %p250 = scmp.ne.s32.totalorder %s245, %s247
      %p251 = scmp.eq.s32.totalorder %s29, 0
      %p252 = por %p250, %p251
      %p253 = scmp.ne.s32.totalorder %s245, %s247
      %p254 = scmp.eq.s32.totalorder %s34, 3
      %p255 = por %p253, %p254
      %p256 = scmp.ne.s32.totalorder %s247, %s248
      %p257 = scmp.eq.s32.totalorder %s34, 0
      %p258 = por %p256, %p257
      %p259 = scmp.ne.s32.totalorder %s247, %s248
      %p260 = scmp.eq.s32.totalorder %s35, 3
      %p261 = por %p259, %p260
      %p263 = scmp.ne.s32.totalorder %s248, %s262
      %p264 = scmp.eq.s32.totalorder %s35, 0
      %p265 = por %p263, %p264
      %s267 = sadd.s32 %s266, 1
      %p270 = scmp.eq.s32.totalorder %s29, 3
      %p271 = scmp.ne.s32.totalorder %s266, %s268
      %p272 = scmp.eq.s32.totalorder %s29, 0
      %p273 = por %p271, %p272
      %p274 = scmp.ne.s32.totalorder %s266, %s268
      %p275 = scmp.eq.s32.totalorder %s34, 3
      %p276 = por %p274, %p275
      %p277 = scmp.ne.s32.totalorder %s268, %s269
      %p278 = scmp.eq.s32.totalorder %s34, 0
      %p279 = por %p277, %p278
      %p280 = scmp.ne.s32.totalorder %s268, %s269
      %p281 = scmp.eq.s32.totalorder %s35, 3
      %p282 = por %p280, %p281
      %p284 = scmp.ne.s32.totalorder %s269, %s283
      %p285 = scmp.eq.s32.totalorder %s35, 0
      %p286 = por %p284, %p285
      %s288 = sadd.s32 %s287, 1
      %p291 = scmp.eq.s32.totalorder %s29, 3
      %p292 = scmp.ne.s32.totalorder %s287, %s289
      %p293 = scmp.eq.s32.totalorder %s29, 0
      %p294 = por %p292, %p293
      %p295 = scmp.ne.s32.totalorder %s287, %s289
      %p296 = scmp.eq.s32.totalorder %s34, 3
      %p297 = por %p295, %p296
      %p298 = scmp.ne.s32.totalorder %s289, %s290
      %p299 = scmp.eq.s32.totalorder %s34, 0
      %p300 = por %p298, %p299
      %p301 = scmp.ne.s32.totalorder %s289, %s290
      %p302 = scmp.eq.s32.totalorder %s35, 3
      %p303 = por %p301, %p302
      %p305 = scmp.ne.s32.totalorder %s290, %s304
      %p306 = scmp.eq.s32.totalorder %s35, 0
      %p307 = por %p305, %p306
      %s309 = sadd.s32 %s308, 1
      %p312 = scmp.eq.s32.totalorder %s29, 3
      %p313 = scmp.ne.s32.totalorder %s308, %s310
      %p314 = scmp.eq.s32.totalorder %s29, 0
      %p315 = por %p313, %p314
      %p316 = scmp.ne.s32.totalorder %s308, %s310
      %p317 = scmp.eq.s32.totalorder %s34, 3
      %p318 = por %p316, %p317
      %p319 = scmp.ne.s32.totalorder %s310, %s311
      %p320 = scmp.eq.s32.totalorder %s34, 0
      %p321 = por %p319, %p320
      %p322 = scmp.ne.s32.totalorder %s310, %s311
      %p323 = scmp.eq.s32.totalorder %s35, 3
      %p324 = por %p322, %p323
      %p326 = scmp.ne.s32.totalorder %s311, %s325
      %p327 = scmp.eq.s32.totalorder %s35, 0
      %p328 = por %p326, %p327
      %s329 = ssub.s32 %s36, %s48
      %p330 = scmp.eq.s32.totalorder %s329, 0
      %s332 = sadd.s32 %s331, 1
      %s333 = scalar_select %p330, %s331, %s332
      %p336 = pneg %p330
      %p337 = scmp.eq.s32.totalorder %s29, 3
      %p338 = por %p336, %p337
      %p339 = scmp.ne.s32.totalorder %s331, %s334
      %p340 = scmp.eq.s32.totalorder %s29, 0
      %p341 = por %p339, %p340
      %p342 = scmp.ne.s32.totalorder %s331, %s334
      %p343 = scmp.eq.s32.totalorder %s34, 3
      %p344 = por %p342, %p343
      %p345 = scmp.ne.s32.totalorder %s334, %s335
      %p346 = scmp.eq.s32.totalorder %s34, 0
      %p347 = por %p345, %p346
      %p348 = scmp.ne.s32.totalorder %s334, %s335
      %p349 = scmp.eq.s32.totalorder %s35, 3
      %p350 = por %p348, %p349
      %p352 = scmp.ne.s32.totalorder %s335, %s351
      %p353 = scmp.eq.s32.totalorder %s35, 0
      %p354 = por %p352, %p353
      %s355 = ssub.s32 %s36, %s48
      %p356 = scmp.eq.s32.totalorder %s355, 0
      %s358 = sadd.s32 %s357, 1
      %s359 = scalar_select %p356, %s357, %s358
      %p362 = pneg %p356
      %p363 = scmp.eq.s32.totalorder %s29, 3
      %p364 = por %p362, %p363
      %p365 = scmp.ne.s32.totalorder %s357, %s360
      %p366 = scmp.eq.s32.totalorder %s29, 0
      %p367 = por %p365, %p366
      %p368 = scmp.ne.s32.totalorder %s357, %s360
      %p369 = scmp.eq.s32.totalorder %s34, 3
      %p370 = por %p368, %p369
      %p371 = scmp.ne.s32.totalorder %s360, %s361
      %p372 = scmp.eq.s32.totalorder %s34, 0
      %p373 = por %p371, %p372
      %p374 = scmp.ne.s32.totalorder %s360, %s361
      %p375 = scmp.eq.s32.totalorder %s35, 3
      %p376 = por %p374, %p375
      %p378 = scmp.ne.s32.totalorder %s361, %s377
      %p379 = scmp.eq.s32.totalorder %s35, 0
      %p380 = por %p378, %p379
      %p381 = scmp.le.s32.totalorder 1, %s29
      %p382 = scmp.lt.s32.totalorder %s29, 5
      %p383 = pnand %p381, %p382
      %p384 = pneg %p383
      // Predicated region
      $region9: #{distill_cls_forward.1} parent=5 // pred_check
        _
      $region10: #{distill_cls_forward.1} parent=5 // pred_check_branch
        %386 = sbr.rel (%p383) target = $region12
      $region11: #{distill_cls_forward.1} parent=5 // pred_region
        %s387 = ssub.s32 %s29, 1
        // Predicated region
        $region13: #{distill_cls_forward.1} parent=11 // pred_check
          %p388 = pneg %p90
        $region14: #{distill_cls_forward.1} parent=11 // pred_check_branch
          %390 = sbr.rel (%p388) target = $region16
        $region15: #{distill_cls_forward.1} parent=11 // pred_region
          _
        $region16: #{distill_cls_forward.1} parent=11 // pred_fallthru
          _
        // Predicated region
        $region17: #{distill_cls_forward.1} parent=11 // pred_check
          %p391 = pneg %p111
        $region18: #{distill_cls_forward.1} parent=11 // pred_check_branch
          %393 = sbr.rel (%p391) target = $region20
        $region19: #{distill_cls_forward.1} parent=11 // pred_region
          _
        $region20: #{distill_cls_forward.1} parent=11 // pred_fallthru
          _
        // Predicated region
        $region21: #{distill_cls_forward.1} parent=11 // pred_check
          %p394 = pneg %p132
        $region22: #{distill_cls_forward.1} parent=11 // pred_check_branch
          %396 = sbr.rel (%p394) target = $region24
        $region23: #{distill_cls_forward.1} parent=11 // pred_region
          %398 = vsyncadd [#allocation5], 0
          %s399 = sshll.u32 %s3, 4
          %s400 = int_to_ptr.hbm [resolvable:$true] %s399
          %s401 = sshll.u32 [#allocation4], 4
          %s402 = int_to_ptr.vmem [resolvable:$true] %s401
          %407 = dma.hbm_to_vmem [thread:$0]  %s400, 1024, %s402, [#allocation5], 64, 64, 4
        $region24: #{distill_cls_forward.1} parent=11 // pred_fallthru
          _
        // Predicated region
        $region25: #{distill_cls_forward.1} parent=11 // pred_check
          %p408 = pneg %p153
        $region26: #{distill_cls_forward.1} parent=11 // pred_check_branch
          %410 = sbr.rel (%p408) target = $region28
        $region27: #{distill_cls_forward.1} parent=11 // pred_region
          _
        $region28: #{distill_cls_forward.1} parent=11 // pred_fallthru
          _
        // Predicated region
        $region29: #{distill_cls_forward.1} parent=11 // pred_check
          %p411 = pneg %p174
        $region30: #{distill_cls_forward.1} parent=11 // pred_check_branch
          %413 = sbr.rel (%p411) target = $region32
        $region31: #{distill_cls_forward.1} parent=11 // pred_region
          _
        $region32: #{distill_cls_forward.1} parent=11 // pred_fallthru
          _
        // Predicated region
        $region33: #{distill_cls_forward.1} parent=11 // pred_check
          %p414 = pneg %p195
        $region34: #{distill_cls_forward.1} parent=11 // pred_check_branch
          %416 = sbr.rel (%p414) target = $region36
        $region35: #{distill_cls_forward.1} parent=11 // pred_region
          _
        $region36: #{distill_cls_forward.1} parent=11 // pred_fallthru
          _
        // Predicated region
        $region37: #{distill_cls_forward.1} parent=11 // pred_check
          %p417 = pneg %p216
        $region38: #{distill_cls_forward.1} parent=11 // pred_check_branch
          %419 = sbr.rel (%p417) target = $region40
        $region39: #{distill_cls_forward.1} parent=11 // pred_region
          _
        $region40: #{distill_cls_forward.1} parent=11 // pred_fallthru
          _
        // Predicated region
        $region41: #{distill_cls_forward.1} parent=11 // pred_check
          %p420 = pneg %p237
        $region42: #{distill_cls_forward.1} parent=11 // pred_check_branch
          %422 = sbr.rel (%p420) target = $region44
        $region43: #{distill_cls_forward.1} parent=11 // pred_region
          _
        $region44: #{distill_cls_forward.1} parent=11 // pred_fallthru
          _
        // Predicated region
        $region45: #{distill_cls_forward.1} parent=11 // pred_check
          %p423 = pneg %p258
        $region46: #{distill_cls_forward.1} parent=11 // pred_check_branch
          %425 = sbr.rel (%p423) target = $region48
        $region47: #{distill_cls_forward.1} parent=11 // pred_region
          _
        $region48: #{distill_cls_forward.1} parent=11 // pred_fallthru
          _
        // Predicated region
        $region49: #{distill_cls_forward.1} parent=11 // pred_check
          %p426 = pneg %p279
        $region50: #{distill_cls_forward.1} parent=11 // pred_check_branch
          %428 = sbr.rel (%p426) target = $region52
        $region51: #{distill_cls_forward.1} parent=11 // pred_region
          _
        $region52: #{distill_cls_forward.1} parent=11 // pred_fallthru
          _
        // Predicated region
        $region53: #{distill_cls_forward.1} parent=11 // pred_check
          %p429 = pneg %p300
        $region54: #{distill_cls_forward.1} parent=11 // pred_check_branch
          %431 = sbr.rel (%p429) target = $region56
        $region55: #{distill_cls_forward.1} parent=11 // pred_region
          %433 = vsyncadd [#allocation8], 0
          %s434 = sshll.u32 %s11, 4
          %s435 = int_to_ptr.hbm [resolvable:$true] %s434
          %s436 = sshll.u32 [#allocation7], 4
          %s437 = int_to_ptr.vmem [resolvable:$true] %s436
          %442 = dma.hbm_to_vmem [thread:$0]  %s435, 2048, %s437, [#allocation8], 128, 128, 8
        $region56: #{distill_cls_forward.1} parent=11 // pred_fallthru
          _
        // Predicated region
        $region57: #{distill_cls_forward.1} parent=11 // pred_check
          %p443 = pneg %p321
        $region58: #{distill_cls_forward.1} parent=11 // pred_check_branch
          %445 = sbr.rel (%p443) target = $region60
        $region59: #{distill_cls_forward.1} parent=11 // pred_region
          _
        $region60: #{distill_cls_forward.1} parent=11 // pred_fallthru
          _
      $region12: #{distill_cls_forward.1} parent=5 // pred_fallthru
        _
      %p446 = scmp.lt.s32.totalorder %s29, 4
      // Predicated region
      $region61: #{distill_cls_forward.1} parent=5 // pred_check
        %p447 = pneg %p446
      $region62: #{distill_cls_forward.1} parent=5 // pred_check_branch
        %449 = sbr.rel (%p447) target = $region64
      $region63: #{distill_cls_forward.1} parent=5 // pred_region
        // Predicated region
        $region65: #{distill_cls_forward.1} parent=63 // pred_check
          %p450 = pneg %p63
        $region66: #{distill_cls_forward.1} parent=63 // pred_check_branch
          %452 = sbr.rel (%p450) target = $region68
        $region67: #{distill_cls_forward.1} parent=63 // pred_region
          %s453 = smul.u32 8, %s37
          %p454 = scmp.lt.s32.totalorder %s36, 1
          %s455 = scalar_select %p454, %s36, 1
          %p456 = scmp.lt.s32.totalorder %s453, 15
          %s457 = scalar_select %p456, %s453, 15
          %s458 = smul.addr %s455, 16
          %s459 = sadd.s32 %s457, %s458
          %s460 = smul.addr %s459, 4
          %s461 = scalar_lea.vmem %s0, %s460
          %s462 = smul.u32 8, %s37
        $region68: #{distill_cls_forward.1} parent=63 // pred_fallthru
          _
      $region64: #{distill_cls_forward.1} parent=5 // pred_fallthru
        _
      %p463 = scmp.le.s32.totalorder 1, %s29
      %p464 = scmp.lt.s32.totalorder %s29, 5
      %p465 = pnand %p463, %p464
      %p466 = pneg %p465
      // Predicated region
      $region69: #{distill_cls_forward.1} parent=5 // pred_check
        _
      $region70: #{distill_cls_forward.1} parent=5 // pred_check_branch
        %468 = sbr.rel (%p465) target = $region72
      $region71: #{distill_cls_forward.1} parent=5 // pred_region
        %s469 = ssub.s32 %s29, 1
        // Predicated region
        $region73: #{distill_cls_forward.1} parent=71 // pred_check
          %p470 = pneg %p132
        $region74: #{distill_cls_forward.1} parent=71 // pred_check_branch
          %472 = sbr.rel (%p470) target = $region76
        $region75: #{distill_cls_forward.1} parent=71 // pred_region
          %474 = dma.done [#allocation5], 1024
        $region76: #{distill_cls_forward.1} parent=71 // pred_fallthru
          _
        // Predicated region
        $region77: #{distill_cls_forward.1} parent=71 // pred_check
          %p475 = pneg %p300
        $region78: #{distill_cls_forward.1} parent=71 // pred_check_branch
          %477 = sbr.rel (%p475) target = $region80
        $region79: #{distill_cls_forward.1} parent=71 // pred_region
          %479 = dma.done [#allocation8], 2048
        $region80: #{distill_cls_forward.1} parent=71 // pred_fallthru
          _
        %s480 = smul.u32 8, %s39
        %p481 = scmp.lt.s32.totalorder %s38, 1
        %s482 = scalar_select %p481, %s38, 1
        %p483 = scmp.lt.s32.totalorder %s480, 15
        %s484 = scalar_select %p483, %s480, 15
        %s485 = smul.addr %s482, 16
        %s486 = sadd.s32 %s484, %s485
        %s487 = smul.addr %s486, 4
        %s488 = scalar_lea.vmem %s0, %s487
        %p489 = pneg %p69
        %p490 = pneg %p66
        %p491 = pneg %p90
        %p492 = pneg %p87
        %p493 = pneg %p111
        %p494 = pneg %p108
        %p495 = pneg %p132
        %p496 = pneg %p129
        %p497 = pneg %p153
        %p498 = pneg %p150
        %p499 = pneg %p174
        %p500 = pneg %p171
        %p501 = pneg %p195
        %p502 = pneg %p192
        %p503 = pneg %p216
        %p504 = pneg %p213
        %p505 = pneg %p237
        %p506 = pneg %p234
        %p507 = pneg %p258
        %p508 = pneg %p255
        %p509 = pneg %p279
        %p510 = pneg %p276
        %p511 = pneg %p300
        %p512 = pneg %p297
        %p513 = pneg %p321
        %p514 = pneg %p318
        %p515 = pneg %p347
        %p516 = pneg %p344
        %s517 = sand.u32 %s334, 1
        %s518 = scalar_lea.sflag [#allocation6], %s517
        %s519 = sand.u32 %s334, 1
        %s520 = scalar_lea.vmem [#allocation9], %s519
        %p521 = pneg %p373
        %p522 = pneg %p370
        %s523 = sand.u32 %s360, 1
        %s524 = scalar_lea.sflag [#allocation11], %s523
        %s525 = sand.u32 %s360, 1
        %s526 = scalar_lea.vmem [#allocation10], %s525
        %s527 = smul.u32 8, %s39
        %p528 = scmp.lt.s32.totalorder %s38, 1
        %s529 = scalar_select %p528, %s38, 1
        %p530 = scmp.lt.s32.totalorder %s527, 15
        %s531 = scalar_select %p530, %s527, 15
        %s532 = smul.addr %s529, 16
        %s533 = sadd.s32 %s531, %s532
        %s534 = smul.addr %s533, 4
        %s535 = scalar_lea.vmem %s0, %s534
        %s536 = smul.u32 8, %s39
        %p538 = scmp.eq.s32.totalorder %s39, 0
        // Predicated region
        $region81: #{distill_cls_forward.1} parent=71 // pred_check
          %p539 = pneg %p538
        $region82: #{distill_cls_forward.1} parent=71 // pred_check_branch
          %541 = sbr.rel (%p539) target = $region84
        $region83: #{distill_cls_forward.1} parent=71 // pred_region
          %542 = vst [vmem:[#allocation2] sm:$0x1] -inf
          %543 = vst [vmem:[#allocation3] sm:$0x1] -inf
        $region84: #{distill_cls_forward.1} parent=71 // pred_fallthru
          _
        %v544 = vld [vmem:[%s535] sm:$0xf]
        %v545 = vld [vmem:[%s535 + $0x4] sm:$0xf]
        %v546 = vld [vmem:[%s535 + $0x8] sm:$0xf]
        %v547 = vld [vmem:[%s535 + $0xc] sm:$0xf]
        %v548 = vld [vmem:[%s535 + $0x10] sm:$0xf]
        %v549 = vld [vmem:[%s535 + $0x14] sm:$0xf]
        %v550 = vld [vmem:[%s535 + $0x18] sm:$0xf]
        %v551 = vld [vmem:[%s535 + $0x1c] sm:$0xf]
        %v552 = vld [vmem:[%s1] sm:$0xf]
        %v553 = vld [vmem:[%s2] sm:$0x1]
        %v555 = vperm.slane %v553, 0
        %v565 = vunpack.c.l.b16 %v544
        %v566 = vunpack.c.l.b16 %v545
        %v567 = vunpack.c.l.b16 %v546
        %v568 = vunpack.c.l.b16 %v547
        %v569 = vunpack.c.l.b16 %v548
        %v570 = vunpack.c.l.b16 %v549
        %v571 = vunpack.c.l.b16 %v550
        %v572 = vunpack.c.l.b16 %v551
        %v573 = vpack.c.b16 %v566, %v565
        %v574 = vpack.c.b16 %v568, %v567
        %v575 = vpack.c.b16 %v570, %v569
        %v576 = vpack.c.b16 %v572, %v571
        %vm577 = vcmask 64512
        %v579 = vsel %vm577, %v573, 0
        %v582 = vsel %vm577, %v574, 0
        %v585 = vsel %vm577, %v575, 0
        %v588 = vsel %vm577, %v576, 0
        %vm590 = vcmask 1043456
        %v592 = vsel %vm590, %v552, 0
        %594 = vmatpush.bf16.msra.mxu0 0
        %595 = vmatpush.bf16.msra.mxu0 0
        %596 = vmatpush.bf16.msra.mxu0 0
        %597 = vmatpush.bf16.msra.mxu0 0
        %598 = vmatpush.bf16.msra.mxu0 0
        %599 = vmatpush.bf16.msra.mxu0 0
        %600 = vmatpush.bf16.msra.mxu0 0
        %601 = vmatpush.bf16.msra.mxu0 %v592
        %602 = vmatmul.bf16.gmra.mxu0 %v579
        %v603 = vpop.f32.mrf.mxu0
        %v604 = vadd.f32 %v555, %v603
        %v605 = vpop.f32.mrf.mxu0
        %v606 = vadd.f32 %v555, %v605
        %607 = vmatmul.bf16.gmra.mxu0 %v582
        %v608 = vpop.f32.mrf.mxu0
        %v609 = vadd.f32 %v555, %v608
        %v610 = vpop.f32.mrf.mxu0
        %v611 = vadd.f32 %v555, %v610
        %612 = vmatmul.bf16.gmra.mxu0 %v585
        %v613 = vpop.f32.mrf.mxu0
        %v614 = vadd.f32 %v555, %v613
        %v615 = vpop.f32.mrf.mxu0
        %v616 = vadd.f32 %v555, %v615
        %617 = vmatmul.bf16.gmra.mxu0 %v588
        %v618 = vpop.f32.mrf.mxu0
        %v619 = vadd.f32 %v555, %v618
        %v620 = vpop.f32.mrf.mxu0
        %v621 = vadd.f32 %v555, %v620
        %622 = vdwg.mxu0
        %v623 = vmax.f32 %v604, 0.0
        %v624 = vmax.f32 %v606, 0.0
        %v625 = vmax.f32 %v609, 0.0
        %v626 = vmax.f32 %v611, 0.0
        %v627 = vmax.f32 %v614, 0.0
        %v628 = vmax.f32 %v616, 0.0
        %v629 = vmax.f32 %v619, 0.0
        %v630 = vmax.f32 %v621, 0.0
        %v631 = vpack.c.bf16 %v624, %v623
        %v632 = vpack.c.bf16 %v626, %v625
        %v633 = vpack.c.bf16 %v628, %v627
        %v634 = vpack.c.bf16 %v630, %v629
        %v635 = vld [vmem:[#allocation4] sm:$0xf]
        %v636 = vld [vmem:[#allocation4 + $0x4] sm:$0xf]
        %v637 = vld [vmem:[#allocation4 + $0x8] sm:$0xf]
        %v638 = vld [vmem:[#allocation4 + $0xc] sm:$0xf]
        %v639 = vld [vmem:[#allocation4 + $0x10] sm:$0xf]
        %v640 = vld [vmem:[#allocation4 + $0x14] sm:$0xf]
        %v641 = vld [vmem:[#allocation4 + $0x18] sm:$0xf]
        %v642 = vld [vmem:[#allocation4 + $0x1c] sm:$0xf]
        %v643 = vld [vmem:[#allocation4 + $0x20] sm:$0xf]
        %v644 = vld [vmem:[#allocation4 + $0x24] sm:$0xf]
        %v645 = vld [vmem:[#allocation4 + $0x28] sm:$0xf]
        %v646 = vld [vmem:[#allocation4 + $0x2c] sm:$0xf]
        %v647 = vld [vmem:[#allocation4 + $0x30] sm:$0xf]
        %v648 = vld [vmem:[#allocation4 + $0x34] sm:$0xf]
        %v649 = vld [vmem:[#allocation4 + $0x38] sm:$0xf]
        %v650 = vld [vmem:[#allocation4 + $0x3c] sm:$0xf]
        %v651 = vld [vmem:[%s4] sm:$0x1]
        %v653 = vperm.slane %v651, 0
        %v671 = vunpack.c.l.b16 %v635
        %v672 = vunpack.c.l.b16 %v636
        %v673 = vunpack.c.l.b16 %v637
        %v674 = vunpack.c.l.b16 %v638
        %v675 = vunpack.c.l.b16 %v639
        %v676 = vunpack.c.l.b16 %v640
        %v677 = vunpack.c.l.b16 %v641
        %v678 = vunpack.c.l.b16 %v642
        %v679 = vunpack.c.l.b16 %v643
        %v680 = vunpack.c.l.b16 %v644
        %v681 = vunpack.c.l.b16 %v645
        %v682 = vunpack.c.l.b16 %v646
        %v683 = vunpack.c.l.b16 %v647
        %v684 = vunpack.c.l.b16 %v648
        %v685 = vunpack.c.l.b16 %v649
        %v686 = vunpack.c.l.b16 %v650
        %v687 = vpack.c.b16 %v672, %v671
        %v688 = vpack.c.b16 %v674, %v673
        %v689 = vpack.c.b16 %v676, %v675
        %v690 = vpack.c.b16 %v678, %v677
        %v691 = vpack.c.b16 %v680, %v679
        %v692 = vpack.c.b16 %v682, %v681
        %v693 = vpack.c.b16 %v684, %v683
        %v694 = vpack.c.b16 %v686, %v685
        %703 = vmatpush.bf16.msra.mxu0 %v694
        %704 = vmatpush.bf16.msra.mxu0 %v693
        %705 = vmatpush.bf16.msra.mxu0 %v692
        %706 = vmatpush.bf16.msra.mxu0 %v691
        %707 = vmatpush.bf16.msra.mxu0 %v690
        %708 = vmatpush.bf16.msra.mxu0 %v689
        %709 = vmatpush.bf16.msra.mxu0 %v688
        %710 = vmatpush.bf16.msra.mxu0 %v687
        %711 = vmatmul.bf16.gmra.mxu0 %v631
        %v712 = vpop.f32.mrf.mxu0
        %v713 = vadd.f32 %v653, %v712
        %v714 = vpop.f32.mrf.mxu0
        %v715 = vadd.f32 %v653, %v714
        %716 = vmatmul.bf16.gmra.mxu0 %v632
        %v717 = vpop.f32.mrf.mxu0
        %v718 = vadd.f32 %v653, %v717
        %v719 = vpop.f32.mrf.mxu0
        %v720 = vadd.f32 %v653, %v719
        %721 = vmatmul.bf16.gmra.mxu0 %v633
        %v722 = vpop.f32.mrf.mxu0
        %v723 = vadd.f32 %v653, %v722
        %v724 = vpop.f32.mrf.mxu0
        %v725 = vadd.f32 %v653, %v724
        %726 = vmatmul.bf16.gmra.mxu0 %v634
        %v727 = vpop.f32.mrf.mxu0
        %v728 = vadd.f32 %v653, %v727
        %v729 = vpop.f32.mrf.mxu0
        %v730 = vadd.f32 %v653, %v729
        %731 = vdwg.mxu0
        %v732 = vmax.f32 %v713, 0.0
        %v733 = vmax.f32 %v715, 0.0
        %v734 = vmax.f32 %v718, 0.0
        %v735 = vmax.f32 %v720, 0.0
        %v736 = vmax.f32 %v723, 0.0
        %v737 = vmax.f32 %v725, 0.0
        %v738 = vmax.f32 %v728, 0.0
        %v739 = vmax.f32 %v730, 0.0
        %v740 = vld [vmem:[#allocation2] sm:$0x1]
        %v741 = vmax.f32 %v732, %v736
        %v742 = vmax.f32 %v733, %v737
        %v743 = vmax.f32 %v734, %v738
        %v744 = vmax.f32 %v735, %v739
        %v745 = vmax.f32 %v741, %v742
        %v746 = vmax.f32 %v743, %v744
        %v747 = vmax.f32 %v745, %v746
        %v748 = vrot.slane %v747, 4
        %v749 = vmax.f32 %v747, %v748
        %v750 = vrot.slane %v749, 2
        %v751 = vmax.f32 %v749, %v750
        %v752 = vrot.slane %v751, 1
        %v753 = vmax.f32 %v751, %v752
        %v754 = vmax.f32 %v740, %v753
        %755 = vst [vmem:[#allocation2] sm:$0x1] %v754
        %v756 = vld [vmem:[#allocation3] sm:$0x1]
        %v757 = vmax.f32 %v623, %v627
        %v758 = vmax.f32 %v624, %v628
        %v759 = vmax.f32 %v625, %v629
        %v760 = vmax.f32 %v626, %v630
        %v761 = vmax.f32 %v757, %v758
        %v762 = vmax.f32 %v759, %v760
        %v763 = vmax.f32 %v761, %v762
        %v764 = vrot.slane %v763, 4
        %v765 = vmax.f32 %v763, %v764
        %v766 = vrot.slane %v765, 2
        %v767 = vmax.f32 %v765, %v766
        %v768 = vrot.slane %v767, 1
        %v769 = vmax.f32 %v767, %v768
        %v770 = vmax.f32 %v756, %v769
        %771 = vst [vmem:[#allocation3] sm:$0x1] %v770
        %p772 = scmp.eq.s32.totalorder %s39, 1
        // Predicated region
        $region85: #{distill_cls_forward.1} parent=71 // pred_check
          %p773 = pneg %p772
        $region86: #{distill_cls_forward.1} parent=71 // pred_check_branch
          %775 = sbr.rel (%p773) target = $region88
        $region87: #{distill_cls_forward.1} parent=71 // pred_region
          %v776 = vld [vmem:[#allocation2] sm:$0x1]
          %v777 = vld [vmem:[%s5] sm:$0xff]
          %v778 = vld [vmem:[%s5 + $0x8] sm:$0xff]
          %v779 = vld [vmem:[%s5 + $0x10] sm:$0xff]
          %v780 = vld [vmem:[%s5 + $0x18] sm:$0xff]
          %v781 = vld [vmem:[%s5 + $0x20] sm:$0xff]
          %v782 = vld [vmem:[%s5 + $0x28] sm:$0xff]
          %v783 = vld [vmem:[%s5 + $0x30] sm:$0xff]
          %v784 = vld [vmem:[%s5 + $0x38] sm:$0xff]
          %v785 = vld [vmem:[%s5 + $0x40] sm:$0xff]
          %v786 = vld [vmem:[%s5 + $0x48] sm:$0xff]
          %v787 = vld [vmem:[%s5 + $0x50] sm:$0xff]
          %v788 = vld [vmem:[%s5 + $0x58] sm:$0xff]
          %v789 = vld [vmem:[%s5 + $0x60] sm:$0xff]
          %v790 = vld [vmem:[%s5 + $0x68] sm:$0xff]
          %v791 = vld [vmem:[%s5 + $0x70] sm:$0xff]
          %v792 = vld [vmem:[%s5 + $0x78] sm:$0xff]
          %v793 = vld [vmem:[%s6] sm:$0x1]
          %794 = vmatpush.msra.mxu0 %v792
          %795 = vmatpush.msra.mxu0 %v791
          %796 = vmatpush.msra.mxu0 %v790
          %797 = vmatpush.msra.mxu0 %v789
          %798 = vmatpush.msra.mxu0 %v788
          %799 = vmatpush.msra.mxu0 %v787
          %800 = vmatpush.msra.mxu0 %v786
          %801 = vmatpush.msra.mxu0 %v785
          %802 = vmatpush.msra.mxu0 %v784
          %803 = vmatpush.msra.mxu0 %v783
          %804 = vmatpush.msra.mxu0 %v782
          %805 = vmatpush.msra.mxu0 %v781
          %806 = vmatpush.msra.mxu0 %v780
          %807 = vmatpush.msra.mxu0 %v779
          %808 = vmatpush.msra.mxu0 %v778
          %809 = vmatpush.msra.mxu0 %v777
          %810 = vmatmul.f32.gmra.mxu0 %v776
          %v811 = vpop.f32.mrf.mxu0
          %v812 = vadd.f32 %v793, %v811
          %813 = vdwg.mxu0
          %v814 = vmax.f32 %v812, 0.0
          %v815 = vld [vmem:[%s7] sm:$0xff]
          %v816 = vld [vmem:[%s7 + $0x8] sm:$0xff]
          %v817 = vld [vmem:[%s7 + $0x10] sm:$0xff]
          %v818 = vld [vmem:[%s7 + $0x18] sm:$0xff]
          %v819 = vld [vmem:[%s7 + $0x20] sm:$0xff]
          %v820 = vld [vmem:[%s7 + $0x28] sm:$0xff]
          %v821 = vld [vmem:[%s7 + $0x30] sm:$0xff]
          %v822 = vld [vmem:[%s7 + $0x38] sm:$0xff]
          %v823 = vld [vmem:[%s7 + $0x40] sm:$0xff]
          %v824 = vld [vmem:[%s7 + $0x48] sm:$0xff]
          %v825 = vld [vmem:[%s7 + $0x50] sm:$0xff]
          %v826 = vld [vmem:[%s7 + $0x58] sm:$0xff]
          %v827 = vld [vmem:[%s7 + $0x60] sm:$0xff]
          %v828 = vld [vmem:[%s7 + $0x68] sm:$0xff]
          %v829 = vld [vmem:[%s7 + $0x70] sm:$0xff]
          %v830 = vld [vmem:[%s7 + $0x78] sm:$0xff]
          %v831 = vld [vmem:[%s8] sm:$0x1]
          %832 = vmatpush.msra.mxu0 %v830
          %833 = vmatpush.msra.mxu0 %v829
          %834 = vmatpush.msra.mxu0 %v828
          %835 = vmatpush.msra.mxu0 %v827
          %836 = vmatpush.msra.mxu0 %v826
          %837 = vmatpush.msra.mxu0 %v825
          %838 = vmatpush.msra.mxu0 %v824
          %839 = vmatpush.msra.mxu0 %v823
          %840 = vmatpush.msra.mxu0 %v822
          %841 = vmatpush.msra.mxu0 %v821
          %842 = vmatpush.msra.mxu0 %v820
          %843 = vmatpush.msra.mxu0 %v819
          %844 = vmatpush.msra.mxu0 %v818
          %845 = vmatpush.msra.mxu0 %v817
          %846 = vmatpush.msra.mxu0 %v816
          %847 = vmatpush.msra.mxu0 %v815
          %848 = vmatmul.f32.gmra.mxu0 %v814
          %v849 = vpop.f32.mrf.mxu0
          %v850 = vadd.f32 %v831, %v849
          %851 = vdwg.mxu0
          %852 = vst [vmem:[%s520] sm:$0x1] %v850
          %v853 = vld [vmem:[#allocation3] sm:$0x1]
          %v854 = vld [vmem:[%s9] sm:$0xff]
          %v855 = vld [vmem:[%s9 + $0x8] sm:$0xff]
          %v856 = vld [vmem:[%s9 + $0x10] sm:$0xff]
          %v857 = vld [vmem:[%s9 + $0x18] sm:$0xff]
          %v858 = vld [vmem:[%s9 + $0x20] sm:$0xff]
          %v859 = vld [vmem:[%s9 + $0x28] sm:$0xff]
          %v860 = vld [vmem:[%s9 + $0x30] sm:$0xff]
          %v861 = vld [vmem:[%s9 + $0x38] sm:$0xff]
          %v862 = vld [vmem:[%s9 + $0x40] sm:$0xff]
          %v863 = vld [vmem:[%s9 + $0x48] sm:$0xff]
          %v864 = vld [vmem:[%s9 + $0x50] sm:$0xff]
          %v865 = vld [vmem:[%s9 + $0x58] sm:$0xff]
          %v866 = vld [vmem:[%s9 + $0x60] sm:$0xff]
          %v867 = vld [vmem:[%s9 + $0x68] sm:$0xff]
          %v868 = vld [vmem:[%s9 + $0x70] sm:$0xff]
          %v869 = vld [vmem:[%s9 + $0x78] sm:$0xff]
          %v870 = vld [vmem:[%s10] sm:$0x1]
          %871 = vmatpush.msra.mxu0 %v869
          %872 = vmatpush.msra.mxu0 %v868
          %873 = vmatpush.msra.mxu0 %v867
          %874 = vmatpush.msra.mxu0 %v866
          %875 = vmatpush.msra.mxu0 %v865
          %876 = vmatpush.msra.mxu0 %v864
          %877 = vmatpush.msra.mxu0 %v863
          %878 = vmatpush.msra.mxu0 %v862
          %879 = vmatpush.msra.mxu0 %v861
          %880 = vmatpush.msra.mxu0 %v860
          %881 = vmatpush.msra.mxu0 %v859
          %882 = vmatpush.msra.mxu0 %v858
          %883 = vmatpush.msra.mxu0 %v857
          %884 = vmatpush.msra.mxu0 %v856
          %885 = vmatpush.msra.mxu0 %v855
          %886 = vmatpush.msra.mxu0 %v854
          %887 = vmatmul.f32.gmra.mxu0 %v853
          %v888 = vpop.f32.mrf.mxu0
          %v889 = vadd.f32 %v870, %v888
          %890 = vdwg.mxu0
          %v891 = vmax.f32 %v889, 0.0
          %v892 = vld [vmem:[#allocation7] sm:$0xff]
          %v893 = vld [vmem:[#allocation7 + $0x8] sm:$0xff]
          %v894 = vld [vmem:[#allocation7 + $0x10] sm:$0xff]
          %v895 = vld [vmem:[#allocation7 + $0x18] sm:$0xff]
          %v896 = vld [vmem:[#allocation7 + $0x20] sm:$0xff]
          %v897 = vld [vmem:[#allocation7 + $0x28] sm:$0xff]
          %v898 = vld [vmem:[#allocation7 + $0x30] sm:$0xff]
          %v899 = vld [vmem:[#allocation7 + $0x38] sm:$0xff]
          %v900 = vld [vmem:[#allocation7 + $0x40] sm:$0xff]
          %v901 = vld [vmem:[#allocation7 + $0x48] sm:$0xff]
          %v902 = vld [vmem:[#allocation7 + $0x50] sm:$0xff]
          %v903 = vld [vmem:[#allocation7 + $0x58] sm:$0xff]
          %v904 = vld [vmem:[#allocation7 + $0x60] sm:$0xff]
          %v905 = vld [vmem:[#allocation7 + $0x68] sm:$0xff]
          %v906 = vld [vmem:[#allocation7 + $0x70] sm:$0xff]
          %v907 = vld [vmem:[#allocation7 + $0x78] sm:$0xff]
          %v908 = vld [vmem:[%s12] sm:$0x1]
          %909 = vmatpush.msra.mxu0 %v907
          %910 = vmatpush.msra.mxu0 %v906
          %911 = vmatpush.msra.mxu0 %v905
          %912 = vmatpush.msra.mxu0 %v904
          %913 = vmatpush.msra.mxu0 %v903
          %914 = vmatpush.msra.mxu0 %v902
          %915 = vmatpush.msra.mxu0 %v901
          %916 = vmatpush.msra.mxu0 %v900
          %917 = vmatpush.msra.mxu0 %v899
          %918 = vmatpush.msra.mxu0 %v898
          %919 = vmatpush.msra.mxu0 %v897
          %920 = vmatpush.msra.mxu0 %v896
          %921 = vmatpush.msra.mxu0 %v895
          %922 = vmatpush.msra.mxu0 %v894
          %923 = vmatpush.msra.mxu0 %v893
          %924 = vmatpush.msra.mxu0 %v892
          %925 = vmatmul.f32.gmra.mxu0 %v891
          %v926 = vpop.f32.mrf.mxu0
          %v927 = vadd.f32 %v908, %v926
          %928 = vdwg.mxu0
          %929 = vst [vmem:[%s526] sm:$0x1] %v927
        $region88: #{distill_cls_forward.1} parent=71 // pred_fallthru
          _
        %s930 = sand.u32 %s334, 1
        %s931 = scalar_lea.sflag [#allocation6], %s930
        %s932 = sand.u32 %s334, 1
        %s933 = scalar_lea.vmem [#allocation9], %s932
        %s934 = sand.u32 %s360, 1
        %s935 = scalar_lea.sflag [#allocation11], %s934
        %s936 = sand.u32 %s360, 1
        %s937 = scalar_lea.vmem [#allocation10], %s936
        // Predicated region
        $region89: #{distill_cls_forward.1} parent=71 // pred_check
          %p938 = pneg %p344
        $region90: #{distill_cls_forward.1} parent=71 // pred_check_branch
          %940 = sbr.rel (%p938) target = $region92
        $region91: #{distill_cls_forward.1} parent=71 // pred_region
          %942 = vsyncadd %s931, 0
          %s943 = scalar_lea.hbm %s13, %s38
          %s945 = sshll.u32 %s933, 4
          %s946 = int_to_ptr.vmem [resolvable:$true] %s945
          %s947 = sshll.u32 %s943, 4
          %s948 = int_to_ptr.hbm [resolvable:$true] %s947
          %950 = dma.vmem_to_hbm [thread:$0]  %s946, 16, %s948, %s931
        $region92: #{distill_cls_forward.1} parent=71 // pred_fallthru
          _
        // Predicated region
        $region93: #{distill_cls_forward.1} parent=71 // pred_check
          %p951 = pneg %p370
        $region94: #{distill_cls_forward.1} parent=71 // pred_check_branch
          %953 = sbr.rel (%p951) target = $region96
        $region95: #{distill_cls_forward.1} parent=71 // pred_region
          %955 = vsyncadd %s935, 0
          %s956 = scalar_lea.hbm %s14, %s38
          %s958 = sshll.u32 %s937, 4
          %s959 = int_to_ptr.vmem [resolvable:$true] %s958
          %s960 = sshll.u32 %s956, 4
          %s961 = int_to_ptr.hbm [resolvable:$true] %s960
          %963 = dma.vmem_to_hbm [thread:$0]  %s959, 16, %s961, %s935
        $region96: #{distill_cls_forward.1} parent=71 // pred_fallthru
          _
      $region72: #{distill_cls_forward.1} parent=5 // pred_fallthru
        _
      %p964 = scmp.le.s32.totalorder 2, %s29
      // Predicated region
      $region97: #{distill_cls_forward.1} parent=5 // pred_check
        %p965 = pneg %p964
      $region98: #{distill_cls_forward.1} parent=5 // pred_check_branch
        %967 = sbr.rel (%p965) target = $region100
      $region99: #{distill_cls_forward.1} parent=5 // pred_region
        %s968 = ssub.s32 %s29, 2
        // Predicated region
        $region101: #{distill_cls_forward.1} parent=99 // pred_check
          %p969 = pneg %p350
        $region102: #{distill_cls_forward.1} parent=99 // pred_check_branch
          %971 = sbr.rel (%p969) target = $region104
        $region103: #{distill_cls_forward.1} parent=99 // pred_region
          %s972 = sand.u32 %s335, 1
          %s973 = scalar_lea.sflag [#allocation6], %s972
          %s974 = sand.u32 %s335, 1
          %s975 = scalar_lea.vmem [#allocation9], %s974
          %977 = dma.done %s973, 16
        $region104: #{distill_cls_forward.1} parent=99 // pred_fallthru
          _
        // Predicated region
        $region105: #{distill_cls_forward.1} parent=99 // pred_check
          %p978 = pneg %p376
        $region106: #{distill_cls_forward.1} parent=99 // pred_check_branch
          %980 = sbr.rel (%p978) target = $region108
        $region107: #{distill_cls_forward.1} parent=99 // pred_region
          %s981 = sand.u32 %s361, 1
          %s982 = scalar_lea.sflag [#allocation11], %s981
          %s983 = sand.u32 %s361, 1
          %s984 = scalar_lea.vmem [#allocation10], %s983
          %986 = dma.done %s982, 16
        $region108: #{distill_cls_forward.1} parent=99 // pred_fallthru
          _
      $region100: #{distill_cls_forward.1} parent=5 // pred_fallthru
        _
    $region6: #{distill_cls_forward.1} parent=1 // loop_footer
      %s33 = sadd.s32 1, %s29
    $region7: #{distill_cls_forward.1} parent=1 // loop_footer_branch
      %28 = sbr.rel target = $region3
    $region8: #{distill_cls_forward.1} parent=1 // loop_exit
      _
    %987 = vsyncpa [#allocation5], 1
    %s988 = scalar_lea.sflag [#allocation5], 1
    %989 = vsyncpa %s988, 1
    %990 = vsyncpa [#allocation8], 1
    %991 = vsyncpa [#allocation6], 1
    %s992 = scalar_lea.sflag [#allocation6], 1
    %993 = vsyncpa %s992, 1
    %994 = vsyncpa [#allocation11], 1
    %s995 = scalar_lea.sflag [#allocation11], 1
    %996 = vsyncpa %s995, 1

</llo_original>
